<compile_context>
chip_gen: v7x
topology: tpu7x:2x2x1
jax: 0.10.0
libtpu: 0.0.40
codegen_flags: <defaults>
</compile_context>

<pallas_src>
import jax
import jax.numpy as jnp
from jax.experimental import pallas as pl
from jax.experimental.pallas import tpu as pltpu


def _round_up(x, m):
    return ((x + m - 1) // m) * m


def fcqv_kernel(s_ref, a_ref, w1s_ref, w1a_ref, b1_ref, w2_ref, b2_ref,
                w3r_ref, b3_ref, o_ref):
    # Layer 1: split-W1 form (state/action kept separate -> no concat in HBM).
    h1 = (jnp.dot(s_ref[...], w1s_ref[...], preferred_element_type=jnp.float32)
          + jnp.dot(a_ref[...], w1a_ref[...], preferred_element_type=jnp.float32)
          + b1_ref[...])
    h1 = jnp.maximum(h1, 0.0)                       # f32 VPU math

    # Layer 2: cast activation to the weight dtype (no-op for f32 params,
    # bf16 MXU operands when compute_dtype=bf16); accumulate in f32.
    h2 = jnp.dot(h1.astype(w2_ref.dtype), w2_ref[...],
                 preferred_element_type=jnp.float32) + b2_ref[...]
    h2 = jnp.maximum(h2, 0.0)

    # Layer 3 (hidden -> 1): VPU multiply + lane reduction instead of a
    # 1-column MXU matmul.
    q = jnp.sum(h2 * w3r_ref[...], axis=-1, keepdims=True) + b3_ref[...]
    o_ref[...] = q.astype(o_ref.dtype)


def fcqv_forward(state, action, params, *, tile_b=1024,
                 compute_dtype=jnp.float32):
    """state: (B, state_dim), action: (B, action_dim) -> (B, 1) f32."""
    w1, b1, w2, b2, w3, b3 = params
    state = jnp.asarray(state, jnp.float32)
    action = jnp.asarray(action, jnp.float32)
    B, state_dim = state.shape
    action_dim = action.shape[1]
    hidden1 = w1.shape[1]
    hidden2 = w2.shape[1]

    # Split W1 so the kernel consumes state/action directly (no concat).
    w1s = w1[:state_dim]
    w1a = w1[state_dim:]
    # Final layer weight as a (1, hidden) lane row for the VPU reduce.
    w3_row = jnp.asarray(w3, jnp.float32).reshape(1, hidden2)

    b1 = jnp.asarray(b1, jnp.float32).reshape(1, hidden1)
    b2 = jnp.asarray(b2, jnp.float32).reshape(1, hidden2)
    b3 = jnp.asarray(b3, jnp.float32).reshape(1, 1)

    # Batch tiling: tile must be a multiple of 8 sublanes; pad B up to a
    # whole number of tiles (padded rows produce garbage q, sliced off below).
    tile_b = max(8, min(_round_up(int(tile_b), 8), _round_up(B, 8)))
    Bp = _round_up(B, tile_b)
    if Bp != B:
        pad = Bp - B
        state = jnp.pad(state, ((0, pad), (0, 0)))
        action = jnp.pad(action, ((0, pad), (0, 0)))
    num_tiles = Bp // tile_b

    # Optional bf16 MXU-operand path (v6e/v7x); biases/accum stay f32.
    cd = compute_dtype
    state_c = state.astype(cd)
    action_c = action.astype(cd)
    w1s_c = w1s.astype(cd)
    w1a_c = w1a.astype(cd)
    w2_c = jnp.asarray(w2).astype(cd)

    # Batch-tiled activations; weights/biases get constant index_maps so they
    # stay resident in VMEM across the whole grid (Pallas only re-DMAs when
    # the block index changes).
    tiled = lambda feat: pl.BlockSpec((tile_b, feat), lambda i: (i, 0))
    resident = lambda a: pl.BlockSpec(a.shape, lambda i: (0, 0))

    out = pl.pallas_call(
        fcqv_kernel,
        out_shape=jax.ShapeDtypeStruct((Bp, 1), jnp.float32),
        grid=(num_tiles,),
        in_specs=[
            tiled(state_dim),          # state tile
            tiled(action_dim),         # action tile
            resident(w1s_c),
            resident(w1a_c),
            resident(b1),
            resident(w2_c),
            resident(b2),
            resident(w3_row),
            resident(b3),
        ],
        out_specs=pl.BlockSpec((tile_b, 1), lambda i: (i, 0)),
        compiler_params=pltpu.CompilerParams(
            # Batch tiles are independent -> shard across TCs on v7x.
            dimension_semantics=("parallel",),
        ),
    )(state_c, action_c, w1s_c, w1a_c, b1, w2_c, b2, w3_row, b3)

    return out[:B]


def init_params(key, state_dim, action_dim, hidden_dims=(32, 32)):
    """Deterministic init; weights stored as (in, out), biases as (1, out)."""
    dims = [state_dim + action_dim, *hidden_dims, 1]
    params = []
    for i in range(len(dims) - 1):
        key, kw, kb = jax.random.split(key, 3)
        fan_in = dims[i]
        bound = 1.0 / jnp.sqrt(fan_in)
        w = jax.random.uniform(kw, (dims[i], dims[i + 1]), jnp.float32,
                               -bound, bound)
        b = jax.random.uniform(kb, (1, dims[i + 1]), jnp.float32, -bound, bound)
        params += [w, b]
    return tuple(params)


def fcqv_reference(state, action, params):
    w1, b1, w2, b2, w3, b3 = params
    x = jnp.concatenate([state, action], axis=1)
    h1 = jnp.maximum(x @ w1 + b1, 0.0)
    h2 = jnp.maximum(h1 @ w2 + b2, 0.0)
    return h2 @ w3 + b3


if __name__ == "__main__":
    key = jax.random.PRNGKey(0)
    batch, state_dim, action_dim = 8, 6, 2

    k_params, k_state, k_action = jax.random.split(key, 3)
    params = init_params(k_params, state_dim, action_dim, hidden_dims=(32, 32))
    state = jax.random.normal(k_state, (batch, state_dim), jnp.float32)
    action = jax.random.normal(k_action, (batch, action_dim), jnp.float32)

    # Small-batch check (single grid step).
    q = fcqv_forward(state, action, params)
    q = jax.block_until_ready(q)
    q_ref = fcqv_reference(state, action, params)
    assert q.shape == (batch, 1)
    assert jnp.allclose(q, q_ref, atol=1e-5, rtol=1e-5)

    # Multi-tile + padding check (grid of 3 tiles, B not a tile multiple).
    k_state2, k_action2 = jax.random.split(jax.random.PRNGKey(1))
    B2 = 300
    state2 = jax.random.normal(k_state2, (B2, state_dim), jnp.float32)
    action2 = jax.random.normal(k_action2, (B2, action_dim), jnp.float32)
    q2 = jax.block_until_ready(fcqv_forward(state2, action2, params,
                                            tile_b=128))
    q2_ref = fcqv_reference(state2, action2, params)
    assert q2.shape == (B2, 1)
    assert jnp.allclose(q2, q2_ref, atol=1e-5, rtol=1e-5)

    print("KERNEL_OK")
</pallas_src>

<mosaic_0001>
module attributes {stable_mosaic.version = 11 : i64} {
  func.func @fcqv_kernel(%arg0: i32, %arg1: memref<8x6xf32, #tpu.memory_space<vmem>>, %arg2: memref<8x2xf32, #tpu.memory_space<vmem>>, %arg3: memref<6x32xf32, #tpu.memory_space<vmem>>, %arg4: memref<2x32xf32, #tpu.memory_space<vmem>>, %arg5: memref<1x32xf32, #tpu.memory_space<vmem>>, %arg6: memref<32x32xf32, #tpu.memory_space<vmem>>, %arg7: memref<1x32xf32, #tpu.memory_space<vmem>>, %arg8: memref<1x32xf32, #tpu.memory_space<vmem>>, %arg9: memref<1x1xf32, #tpu.memory_space<vmem>>, %arg10: memref<8x1xf32, #tpu.memory_space<vmem>>) attributes {dimension_semantics = [#tpu.dimension_semantics<parallel>], iteration_bounds = array<i64: 1>, scalar_prefetch = 0 : i64, scratch_operands = 0 : i64, tpu.core_type = #tpu.core_type<tc>, window_params = [{transform_indices = @transform_0, window_bounds = array<i64: 8, 6>}, {transform_indices = @transform_1, window_bounds = array<i64: 8, 2>}, {pipeline_mode = #tpu.pipeline_mode<synchronous>, transform_indices = @transform_2, window_bounds = array<i64: 6, 32>}, {pipeline_mode = #tpu.pipeline_mode<synchronous>, transform_indices = @transform_3, window_bounds = array<i64: 2, 32>}, {pipeline_mode = #tpu.pipeline_mode<synchronous>, transform_indices = @transform_4, window_bounds = array<i64: 1, 32>}, {pipeline_mode = #tpu.pipeline_mode<synchronous>, transform_indices = @transform_5, window_bounds = array<i64: 32, 32>}, {pipeline_mode = #tpu.pipeline_mode<synchronous>, transform_indices = @transform_6, window_bounds = array<i64: 1, 32>}, {pipeline_mode = #tpu.pipeline_mode<synchronous>, transform_indices = @transform_7, window_bounds = array<i64: 1, 32>}, {pipeline_mode = #tpu.pipeline_mode<synchronous>, transform_indices = @transform_8, window_bounds = array<i64: 1, 1>}, {transform_indices = @transform_9, window_bounds = array<i64: 8, 1>}]} {
    %c0 = arith.constant 0 : index
    %c0_0 = arith.constant 0 : index
    %0 = vector.load %arg1[%c0, %c0_0] : memref<8x6xf32, #tpu.memory_space<vmem>>, vector<8x6xf32>
    %c0_1 = arith.constant 0 : index
    %c0_2 = arith.constant 0 : index
    %1 = vector.load %arg3[%c0_1, %c0_2] : memref<6x32xf32, #tpu.memory_space<vmem>>, vector<6x32xf32>
    %cst = arith.constant dense<0.000000e+00> : vector<8x32xf32>
    %2 = tpu.matmul %0, %1, %cst {dimension_numbers = #tpu.dot_dimension_numbers<[1], [0], [0], [1], [0, 0, 1, 1], [], []>} : vector<8x6xf32>, vector<6x32xf32>, vector<8x32xf32> -> vector<8x32xf32>
    %c0_3 = arith.constant 0 : index
    %c0_4 = arith.constant 0 : index
    %3 = vector.load %arg2[%c0_3, %c0_4] : memref<8x2xf32, #tpu.memory_space<vmem>>, vector<8x2xf32>
    %c0_5 = arith.constant 0 : index
    %c0_6 = arith.constant 0 : index
    %4 = vector.load %arg4[%c0_5, %c0_6] : memref<2x32xf32, #tpu.memory_space<vmem>>, vector<2x32xf32>
    %cst_7 = arith.constant dense<0.000000e+00> : vector<8x32xf32>
    %5 = tpu.matmul %3, %4, %cst_7 {dimension_numbers = #tpu.dot_dimension_numbers<[1], [0], [0], [1], [0, 0, 1, 1], [], []>} : vector<8x2xf32>, vector<2x32xf32>, vector<8x32xf32> -> vector<8x32xf32>
    %6 = arith.addf %2, %5 : vector<8x32xf32>
    %c0_8 = arith.constant 0 : index
    %c0_9 = arith.constant 0 : index
    %7 = vector.load %arg5[%c0_8, %c0_9] : memref<1x32xf32, #tpu.memory_space<vmem>>, vector<1x32xf32>
    %8 = vector.broadcast %7 : vector<1x32xf32> to vector<8x32xf32>
    %9 = arith.addf %6, %8 : vector<8x32xf32>
    %cst_10 = arith.constant 0.000000e+00 : f32
    %10 = vector.broadcast %cst_10 : f32 to vector<8x32xf32>
    %11 = arith.maximumf %9, %10 : vector<8x32xf32>
    %c0_11 = arith.constant 0 : index
    %c0_12 = arith.constant 0 : index
    %12 = vector.load %arg6[%c0_11, %c0_12] : memref<32x32xf32, #tpu.memory_space<vmem>>, vector<32x32xf32>
    %cst_13 = arith.constant dense<0.000000e+00> : vector<8x32xf32>
    %13 = tpu.matmul %11, %12, %cst_13 {dimension_numbers = #tpu.dot_dimension_numbers<[1], [0], [0], [1], [0, 0, 1, 1], [], []>} : vector<8x32xf32>, vector<32x32xf32>, vector<8x32xf32> -> vector<8x32xf32>
    %c0_14 = arith.constant 0 : index
    %c0_15 = arith.constant 0 : index
    %14 = vector.load %arg7[%c0_14, %c0_15] : memref<1x32xf32, #tpu.memory_space<vmem>>, vector<1x32xf32>
    %15 = vector.broadcast %14 : vector<1x32xf32> to vector<8x32xf32>
    %16 = arith.addf %13, %15 : vector<8x32xf32>
    %cst_16 = arith.constant 0.000000e+00 : f32
    %17 = vector.broadcast %cst_16 : f32 to vector<8x32xf32>
    %18 = arith.maximumf %16, %17 : vector<8x32xf32>
    %c0_17 = arith.constant 0 : index
    %c0_18 = arith.constant 0 : index
    %19 = vector.load %arg8[%c0_17, %c0_18] : memref<1x32xf32, #tpu.memory_space<vmem>>, vector<1x32xf32>
    %20 = vector.broadcast %19 : vector<1x32xf32> to vector<8x32xf32>
    %21 = arith.mulf %18, %20 : vector<8x32xf32>
    %cst_19 = arith.constant dense<0.000000e+00> : vector<8xf32>
    %22 = vector.multi_reduction <add>, %21, %cst_19 [1] : vector<8x32xf32> to vector<8xf32>
    %23 = vector.shape_cast %22 : vector<8xf32> to vector<8x1xf32>
    %c0_20 = arith.constant 0 : index
    %c0_21 = arith.constant 0 : index
    %24 = vector.load %arg9[%c0_20, %c0_21] : memref<1x1xf32, #tpu.memory_space<vmem>>, vector<1x1xf32>
    %25 = vector.broadcast %24 : vector<1x1xf32> to vector<8x1xf32>
    %26 = arith.addf %23, %25 : vector<8x1xf32>
    %c0_22 = arith.constant 0 : index
    %c0_23 = arith.constant 0 : index
    %27 = vector.load %arg10[%c0_22, %c0_23] : memref<8x1xf32, #tpu.memory_space<vmem>>, vector<8x1xf32>
    tpu.vector_store %arg10[%c0_22, %c0_23], %26 {strides = array<i32>} : memref<8x1xf32, #tpu.memory_space<vmem>>, vector<8x1xf32>,
    return
  }
  func.func @transform_0(%arg0: i32) -> (i32, i32) {
    %c0_i32 = arith.constant 0 : i32
    %c0_i32_0 = arith.constant 0 : i32
    return %arg0, %c0_i32 : i32, i32
  }
  func.func @transform_1(%arg0: i32) -> (i32, i32) {
    %c0_i32 = arith.constant 0 : i32
    %c0_i32_0 = arith.constant 0 : i32
    return %arg0, %c0_i32 : i32, i32
  }
  func.func @transform_2(%arg0: i32) -> (i32, i32) {
    %c0_i32 = arith.constant 0 : i32
    %c0_i32_0 = arith.constant 0 : i32
    %c0_i32_1 = arith.constant 0 : i32
    return %c0_i32, %c0_i32_0 : i32, i32
  }
  func.func @transform_3(%arg0: i32) -> (i32, i32) {
    %c0_i32 = arith.constant 0 : i32
    %c0_i32_0 = arith.constant 0 : i32
    %c0_i32_1 = arith.constant 0 : i32
    return %c0_i32, %c0_i32_0 : i32, i32
  }
  func.func @transform_4(%arg0: i32) -> (i32, i32) {
    %c0_i32 = arith.constant 0 : i32
    %c0_i32_0 = arith.constant 0 : i32
    %c0_i32_1 = arith.constant 0 : i32
    return %c0_i32, %c0_i32_0 : i32, i32
  }
  func.func @transform_5(%arg0: i32) -> (i32, i32) {
    %c0_i32 = arith.constant 0 : i32
    %c0_i32_0 = arith.constant 0 : i32
    %c0_i32_1 = arith.constant 0 : i32
    return %c0_i32, %c0_i32_0 : i32, i32
  }
  func.func @transform_6(%arg0: i32) -> (i32, i32) {
    %c0_i32 = arith.constant 0 : i32
    %c0_i32_0 = arith.constant 0 : i32
    %c0_i32_1 = arith.constant 0 : i32
    return %c0_i32, %c0_i32_0 : i32, i32
  }
  func.func @transform_7(%arg0: i32) -> (i32, i32) {
    %c0_i32 = arith.constant 0 : i32
    %c0_i32_0 = arith.constant 0 : i32
    %c0_i32_1 = arith.constant 0 : i32
    return %c0_i32, %c0_i32_0 : i32, i32
  }
  func.func @transform_8(%arg0: i32) -> (i32, i32) {
    %c0_i32 = arith.constant 0 : i32
    %c0_i32_0 = arith.constant 0 : i32
    %c0_i32_1 = arith.constant 0 : i32
    return %c0_i32, %c0_i32_0 : i32, i32
  }
  func.func @transform_9(%arg0: i32) -> (i32, i32) {
    %c0_i32 = arith.constant 0 : i32
    %c0_i32_0 = arith.constant 0 : i32
    return %arg0, %c0_i32 : i32, i32
  }
}

</mosaic_0001>

<llo_original>
// kernel: tpu_custom_call.1
$region0: #{tpu_custom_call.1}
  #allocation0 [shape = 'u32[]', space=smem, size = 0x4, offset = 0x4, fixed_abs, tag = 'smem constant byte address 0x4 - core index']
  #allocation1 [shape = 'u32[144,128]{1,0:T(1,128)}', space=vmem, size = 0x12000, scoped, tag = 'internal scratch']
  #allocation2 [shape = 'f32[1,1]{1,0:T(1,128)S(1)}', space=vmem, size = 0x200, scoped, tag = 'scoped memory for tpu_custom_call.1']
  %s0 = inlined_call_operand.hbm [shape: f32[8,6], index: 0, kind: input, shape index: {}]
  %s1 = inlined_call_operand.vmem [shape: f32[8,2], index: 1, kind: input, shape index: {}]
  %s2 = inlined_call_operand.hbm [shape: f32[6,32], index: 2, kind: input, shape index: {}]
  %s3 = inlined_call_operand.hbm [shape: f32[2,32], index: 3, kind: input, shape index: {}]
  %s4 = inlined_call_operand.hbm [shape: f32[1,32], index: 4, kind: input, shape index: {}]
  %s5 = inlined_call_operand.vmem [shape: f32[32,32], index: 5, kind: input, shape index: {}]
  %s6 = inlined_call_operand.vmem [shape: f32[1,32], index: 6, kind: input, shape index: {}]
  %s7 = inlined_call_operand.vmem [shape: f32[1,32], index: 7, kind: input, shape index: {}]
  %s8 = inlined_call_operand.<no memory space> [shape: f32[1,1], index: 8, kind: input, shape index: {}]
  %s9 = inlined_call_operand.vmem [shape: f32[8,1], index: 9, kind: output, shape index: {}]
  %s10 = sld [smem:[#allocation0]]
  $region62: #{tpu_custom_call.1} parent=0
    _
  %s12 = ssub.s32 1, %s10
  %s13 = scalar_select 0, %s12, %s10
  %v14 = vstv %s8
  %15 = vst [vmem:[#allocation2] sm:$0x1] %v14
  $region1: #{tpu_custom_call.1} parent=0
    #allocation3 [shape = 'u8[4096]{0}', space=vmem, size = 0x1000, scoped, tag = 'input window, operand 0, single buffered']
    #allocation4 [shape = 's32[1]{0}', space=sflag, size = 0x4, scoped, tag = 'scoped memory for tpu_custom_call.1']
    #allocation5 [shape = 'u8[4096]{0}', space=vmem, size = 0x1000, scoped, tag = 'input window, operand 2, single buffered']
    #allocation6 [shape = 's32[1]{0}', space=sflag, size = 0x4, scoped, tag = 'scoped memory for tpu_custom_call.1']
    #allocation7 [shape = 'u8[1024]{0}', space=vmem, size = 0x400, scoped, tag = 'input window, operand 3, single buffered']
    #allocation8 [shape = 'u8[512]{0}', space=vmem, size = 0x400, scoped, tag = 'input window, operand 4, single buffered']
    #allocation9 [shape = 's32[1]{0}', space=sflag, size = 0x4, scoped, tag = 'scoped memory for tpu_custom_call.1']
    %16 = vsyncpa [#allocation4], 0
    %17 = vsyncpa [#allocation6], 0
    %18 = vsyncpa [#allocation9], 0
    // Predicated region
    $region2: #{tpu_custom_call.1} parent=1 // pred_check
      _
    $region3: #{tpu_custom_call.1} parent=1 // pred_check_branch
      %20 = sbr.rel (0) target = $region5
    $region4: #{tpu_custom_call.1} parent=1 // pred_region
      %s22 = ssub.s32 128, 128
      %23 = vsyncadd [#allocation4], %s22
      %s25 = sshll.u32 [#allocation3], 4
      %s26 = int_to_ptr.vmem [resolvable:$true] %s25
      %28 = dma.hbm_to_vmem [thread:$0]  %s0, 128, %s26, [#allocation4]
    $region5: #{tpu_custom_call.1} parent=1 // pred_fallthru
      _
    // Predicated region
    $region6: #{tpu_custom_call.1} parent=1 // pred_check
      _
    $region7: #{tpu_custom_call.1} parent=1 // pred_check_branch
      %30 = sbr.rel (0) target = $region9
    $region8: #{tpu_custom_call.1} parent=1 // pred_region
      _
    $region9: #{tpu_custom_call.1} parent=1 // pred_fallthru
      _
    // Predicated region
    $region10: #{tpu_custom_call.1} parent=1 // pred_check
      _
    $region11: #{tpu_custom_call.1} parent=1 // pred_check_branch
      %32 = sbr.rel (0) target = $region13
    $region12: #{tpu_custom_call.1} parent=1 // pred_region
      %s34 = ssub.s32 128, 128
      %35 = vsyncadd [#allocation6], %s34
      %s37 = sshll.u32 [#allocation5], 4
      %s38 = int_to_ptr.vmem [resolvable:$true] %s37
      %40 = dma.hbm_to_vmem [thread:$0]  %s2, 128, %s38, [#allocation6]
    $region13: #{tpu_custom_call.1} parent=1 // pred_fallthru
      _
    // Predicated region
    $region14: #{tpu_custom_call.1} parent=1 // pred_check
      _
    $region15: #{tpu_custom_call.1} parent=1 // pred_check_branch
      %42 = sbr.rel (0) target = $region17
    $region16: #{tpu_custom_call.1} parent=1 // pred_region
      %s44 = ssub.s32 32, 32
      %45 = vsyncadd [#allocation6], %s44
      %s47 = sshll.u32 [#allocation7], 4
      %s48 = int_to_ptr.vmem [resolvable:$true] %s47
      %50 = dma.hbm_to_vmem [thread:$0]  %s3, 32, %s48, [#allocation6]
    $region17: #{tpu_custom_call.1} parent=1 // pred_fallthru
      _
    // Predicated region
    $region18: #{tpu_custom_call.1} parent=1 // pred_check
      _
    $region19: #{tpu_custom_call.1} parent=1 // pred_check_branch
      %52 = sbr.rel (0) target = $region21
    $region20: #{tpu_custom_call.1} parent=1 // pred_region
      %s54 = ssub.s32 16, 16
      %55 = vsyncadd [#allocation9], %s54
      %s57 = sshll.u32 [#allocation8], 4
      %s58 = int_to_ptr.vmem [resolvable:$true] %s57
      %60 = dma.hbm_to_vmem [thread:$0]  %s4, 16, %s58, [#allocation9]
    $region21: #{tpu_custom_call.1} parent=1 // pred_fallthru
      _
    // Predicated region
    $region22: #{tpu_custom_call.1} parent=1 // pred_check
      _
    $region23: #{tpu_custom_call.1} parent=1 // pred_check_branch
      %62 = sbr.rel (0) target = $region25
    $region24: #{tpu_custom_call.1} parent=1 // pred_region
      _
    $region25: #{tpu_custom_call.1} parent=1 // pred_fallthru
      _
    // Predicated region
    $region26: #{tpu_custom_call.1} parent=1 // pred_check
      _
    $region27: #{tpu_custom_call.1} parent=1 // pred_check_branch
      %64 = sbr.rel (0) target = $region29
    $region28: #{tpu_custom_call.1} parent=1 // pred_region
      _
    $region29: #{tpu_custom_call.1} parent=1 // pred_fallthru
      _
    // Predicated region
    $region30: #{tpu_custom_call.1} parent=1 // pred_check
      _
    $region31: #{tpu_custom_call.1} parent=1 // pred_check_branch
      %66 = sbr.rel (0) target = $region33
    $region32: #{tpu_custom_call.1} parent=1 // pred_region
      _
    $region33: #{tpu_custom_call.1} parent=1 // pred_fallthru
      _
    // Predicated region
    $region34: #{tpu_custom_call.1} parent=1 // pred_check
      _
    $region35: #{tpu_custom_call.1} parent=1 // pred_check_branch
      %68 = sbr.rel (0) target = $region37
    $region36: #{tpu_custom_call.1} parent=1 // pred_region
      _
    $region37: #{tpu_custom_call.1} parent=1 // pred_fallthru
      _
    // Predicated region
    $region38: #{tpu_custom_call.1} parent=1 // pred_check
      _
    $region39: #{tpu_custom_call.1} parent=1 // pred_check_branch
      %70 = sbr.rel (0) target = $region41
    $region40: #{tpu_custom_call.1} parent=1 // pred_region
      %71 = dma.done [#allocation4], 128
    $region41: #{tpu_custom_call.1} parent=1 // pred_fallthru
      _
    // Predicated region
    $region42: #{tpu_custom_call.1} parent=1 // pred_check
      _
    $region43: #{tpu_custom_call.1} parent=1 // pred_check_branch
      %73 = sbr.rel (0) target = $region45
    $region44: #{tpu_custom_call.1} parent=1 // pred_region
      %74 = dma.done [#allocation6], 128
    $region45: #{tpu_custom_call.1} parent=1 // pred_fallthru
      _
    // Predicated region
    $region46: #{tpu_custom_call.1} parent=1 // pred_check
      _
    $region47: #{tpu_custom_call.1} parent=1 // pred_check_branch
      %76 = sbr.rel (0) target = $region49
    $region48: #{tpu_custom_call.1} parent=1 // pred_region
      %77 = dma.done [#allocation6], 32
    $region49: #{tpu_custom_call.1} parent=1 // pred_fallthru
      _
    // Predicated region
    $region50: #{tpu_custom_call.1} parent=1 // pred_check
      _
    $region51: #{tpu_custom_call.1} parent=1 // pred_check_branch
      %79 = sbr.rel (0) target = $region53
    $region52: #{tpu_custom_call.1} parent=1 // pred_region
      %80 = dma.done [#allocation9], 16
    $region53: #{tpu_custom_call.1} parent=1 // pred_fallthru
      _
    %v81 = vld [vmem:[#allocation3] sm:$0xff]
    %v82 = vld [vmem:[#allocation5] sm:$0x3f]
    %v83 = vld [vmem:[%s1] sm:$0xff]
    %v84 = vld [vmem:[#allocation7] sm:$0x3]
    %vm85 = vcmask 15360
    %v87 = vsel %vm85, %v83, 0
    %vm89 = vcmask 1041408
    %v91 = vsel %vm89, %v84, 0
    %93 = vmatprep.subr.mxu0 0.0
    %94 = vmatpush1.msra.mxu0 %v91
    %95 = vmatprep.subr.mxu0 0.0
    %96 = vmatpush1.msra.mxu0 0.0
    %97 = vmatprep.subr.mxu0 0.0
    %98 = vmatpush1.msra.mxu0 0.0
    %99 = vmatprep.subr.mxu0 0.0
    %100 = vmatpush1.msra.mxu0 0.0
    %101 = vmatprep.subr.mxu0 0.0
    %102 = vmatpush1.msra.mxu0 0.0
    %103 = vmatprep.subr.mxu0 0.0
    %104 = vmatpush1.msra.mxu0 0.0
    %105 = vmatprep.subr.mxu0 0.0
    %106 = vmatpush1.msra.mxu0 0.0
    %107 = vmatprep.subr.mxu0 0.0
    %108 = vmatpush1.msra.mxu0 0.0
    %109 = vmatprep.subr.mxu0 0.0
    %110 = vmatpush1.msra.mxu0 0.0
    %111 = vmatprep.subr.mxu0 0.0
    %112 = vmatpush1.msra.mxu0 0.0
    %113 = vmatprep.subr.mxu0 0.0
    %114 = vmatpush1.msra.mxu0 0.0
    %115 = vmatprep.subr.mxu0 0.0
    %116 = vmatpush1.msra.mxu0 0.0
    %117 = vmatprep.subr.mxu0 0.0
    %118 = vmatpush1.msra.mxu0 0.0
    %119 = vmatprep.subr.mxu0 0.0
    %120 = vmatpush1.msra.mxu0 0.0
    %121 = vmatprep.subr.mxu0 0.0
    %122 = vmatpush1.msra.mxu0 0.0
    %123 = vmatprep.subr.mxu0 0.0
    %124 = vmatpush1.msra.mxu0 0.0
    %125 = vmatprep.subr.mxu0 0.0
    %126 = vmatpush1.msra.mxu0 0.0
    %127 = vmatprep.subr.mxu0 0.0
    %128 = vmatpush1.msra.mxu0 0.0
    %129 = vmatprep.subr.mxu0 0.0
    %130 = vmatpush1.msra.mxu0 0.0
    %131 = vmatprep.subr.mxu0 0.0
    %132 = vmatpush1.msra.mxu0 0.0
    %133 = vmatprep.subr.mxu0 0.0
    %134 = vmatpush1.msra.mxu0 0.0
    %135 = vmatprep.subr.mxu0 0.0
    %136 = vmatpush1.msra.mxu0 0.0
    %137 = vmatprep.subr.mxu0 0.0
    %138 = vmatpush1.msra.mxu0 0.0
    %139 = vmatprep.subr.mxu0 0.0
    %140 = vmatpush1.msra.mxu0 0.0
    %141 = vmatprep.subr.mxu0 0.0
    %142 = vmatpush1.msra.mxu0 0.0
    %143 = vmatprep.subr.mxu0 0.0
    %144 = vmatpush1.msra.mxu0 0.0
    %145 = vmatprep.subr.mxu0 0.0
    %146 = vmatpush1.msra.mxu0 0.0
    %147 = vmatprep.subr.mxu0 0.0
    %148 = vmatpush1.msra.mxu0 0.0
    %149 = vmatprep.subr.mxu0 0.0
    %150 = vmatpush1.msra.mxu0 0.0
    %151 = vmatprep.subr.mxu0 0.0
    %152 = vmatpush1.msra.mxu0 0.0
    %153 = vmatprep.subr.mxu0 0.0
    %154 = vmatpush1.msra.mxu0 0.0
    %155 = vmatprep.subr.mxu0 0.0
    %156 = vmatpush1.msra.mxu0 0.0
    %157 = vmatprep.mubr.f32.mxu0 0.0
    %158 = vmatmul.mubr.f32.gmra.mrb[0].mxu0 %v87
    %v159 = vpop.f32.mrb[0].mxu0
    %v160 = vadd.f32 0.0, %v159
    %v161 = vpop.f32.mrb[0].mxu0
    %162 = vdwg.mxu0
    %vm163 = vcmask 48128
    %v165 = vsel %vm163, %v81, 0
    %vm167 = vcmask 1045504
    %v169 = vsel %vm167, %v82, 0
    %171 = vmatprep.subr.mxu0 0.0
    %172 = vmatpush1.msra.mxu0 %v169
    %173 = vmatprep.subr.mxu0 0.0
    %174 = vmatpush1.msra.mxu0 0.0
    %175 = vmatprep.subr.mxu0 0.0
    %176 = vmatpush1.msra.mxu0 0.0
    %177 = vmatprep.subr.mxu0 0.0
    %178 = vmatpush1.msra.mxu0 0.0
    %179 = vmatprep.subr.mxu0 0.0
    %180 = vmatpush1.msra.mxu0 0.0
    %181 = vmatprep.subr.mxu0 0.0
    %182 = vmatpush1.msra.mxu0 0.0
    %183 = vmatprep.subr.mxu0 0.0
    %184 = vmatpush1.msra.mxu0 0.0
    %185 = vmatprep.subr.mxu0 0.0
    %186 = vmatpush1.msra.mxu0 0.0
    %187 = vmatprep.subr.mxu0 0.0
    %188 = vmatpush1.msra.mxu0 0.0
    %189 = vmatprep.subr.mxu0 0.0
    %190 = vmatpush1.msra.mxu0 0.0
    %191 = vmatprep.subr.mxu0 0.0
    %192 = vmatpush1.msra.mxu0 0.0
    %193 = vmatprep.subr.mxu0 0.0
    %194 = vmatpush1.msra.mxu0 0.0
    %195 = vmatprep.subr.mxu0 0.0
    %196 = vmatpush1.msra.mxu0 0.0
    %197 = vmatprep.subr.mxu0 0.0
    %198 = vmatpush1.msra.mxu0 0.0
    %199 = vmatprep.subr.mxu0 0.0
    %200 = vmatpush1.msra.mxu0 0.0
    %201 = vmatprep.subr.mxu0 0.0
    %202 = vmatpush1.msra.mxu0 0.0
    %203 = vmatprep.subr.mxu0 0.0
    %204 = vmatpush1.msra.mxu0 0.0
    %205 = vmatprep.subr.mxu0 0.0
    %206 = vmatpush1.msra.mxu0 0.0
    %207 = vmatprep.subr.mxu0 0.0
    %208 = vmatpush1.msra.mxu0 0.0
    %209 = vmatprep.subr.mxu0 0.0
    %210 = vmatpush1.msra.mxu0 0.0
    %211 = vmatprep.subr.mxu0 0.0
    %212 = vmatpush1.msra.mxu0 0.0
    %213 = vmatprep.subr.mxu0 0.0
    %214 = vmatpush1.msra.mxu0 0.0
    %215 = vmatprep.subr.mxu0 0.0
    %216 = vmatpush1.msra.mxu0 0.0
    %217 = vmatprep.subr.mxu0 0.0
    %218 = vmatpush1.msra.mxu0 0.0
    %219 = vmatprep.subr.mxu0 0.0
    %220 = vmatpush1.msra.mxu0 0.0
    %221 = vmatprep.subr.mxu0 0.0
    %222 = vmatpush1.msra.mxu0 0.0
    %223 = vmatprep.subr.mxu0 0.0
    %224 = vmatpush1.msra.mxu0 0.0
    %225 = vmatprep.subr.mxu0 0.0
    %226 = vmatpush1.msra.mxu0 0.0
    %227 = vmatprep.subr.mxu0 0.0
    %228 = vmatpush1.msra.mxu0 0.0
    %229 = vmatprep.subr.mxu0 0.0
    %230 = vmatpush1.msra.mxu0 0.0
    %231 = vmatprep.subr.mxu0 0.0
    %232 = vmatpush1.msra.mxu0 0.0
    %233 = vmatprep.subr.mxu0 0.0
    %234 = vmatpush1.msra.mxu0 0.0
    %235 = vmatprep.mubr.f32.mxu0 0.0
    %236 = vmatmul.mubr.f32.gmra.mrb[0].mxu0 %v165
    %v237 = vpop.f32.mrb[0].mxu0
    %v238 = vadd.f32 %v160, %v237
    %v239 = vpop.f32.mrb[0].mxu0
    %240 = vdwg.mxu0
    %v241 = vld [vmem:[#allocation8] sm:$0x1]
    %v243 = vlaneseq
    %v244 = vshrl.u32 %v243, 7
    %v245 = vsub.s32 0, %v244
    %v246 = vrot.slane %v241, %v245
    %v248 = vadd.f32 %v238, %v246
    %v249 = vmax.f32 %v248, 0.0
    %v250 = vld [vmem:[%s5] sm:$0xff]
    %v251 = vld [vmem:[%s5 + $0x8] sm:$0xff]
    %v252 = vld [vmem:[%s5 + $0x10] sm:$0xff]
    %v253 = vld [vmem:[%s5 + $0x18] sm:$0xff]
    %v254 = vld [vmem:[%s6] sm:$0x1]
    %v256 = vlaneseq
    %v257 = vshrl.u32 %v256, 7
    %v258 = vsub.s32 0, %v257
    %v259 = vrot.slane %v254, %v258
    %vm261 = vcmask 261120
    %v263 = vsel %vm261, %v249, 0
    %265 = vmatprep.subr.mxu0 0.0
    %266 = vmatpush1.msra.mxu0 %v250
    %267 = vmatprep.subr.mxu0 0.0
    %268 = vmatpush1.msra.mxu0 %v251
    %269 = vmatprep.subr.mxu0 0.0
    %270 = vmatpush1.msra.mxu0 %v252
    %271 = vmatprep.subr.mxu0 0.0
    %272 = vmatpush1.msra.mxu0 %v253
    %273 = vmatprep.subr.mxu0 0.0
    %274 = vmatpush1.msra.mxu0 0.0
    %275 = vmatprep.subr.mxu0 0.0
    %276 = vmatpush1.msra.mxu0 0.0
    %277 = vmatprep.subr.mxu0 0.0
    %278 = vmatpush1.msra.mxu0 0.0
    %279 = vmatprep.subr.mxu0 0.0
    %280 = vmatpush1.msra.mxu0 0.0
    %281 = vmatprep.subr.mxu0 0.0
    %282 = vmatpush1.msra.mxu0 0.0
    %283 = vmatprep.subr.mxu0 0.0
    %284 = vmatpush1.msra.mxu0 0.0
    %285 = vmatprep.subr.mxu0 0.0
    %286 = vmatpush1.msra.mxu0 0.0
    %287 = vmatprep.subr.mxu0 0.0
    %288 = vmatpush1.msra.mxu0 0.0
    %289 = vmatprep.subr.mxu0 0.0
    %290 = vmatpush1.msra.mxu0 0.0
    %291 = vmatprep.subr.mxu0 0.0
    %292 = vmatpush1.msra.mxu0 0.0
    %293 = vmatprep.subr.mxu0 0.0
    %294 = vmatpush1.msra.mxu0 0.0
    %295 = vmatprep.subr.mxu0 0.0
    %296 = vmatpush1.msra.mxu0 0.0
    %297 = vmatprep.subr.mxu0 0.0
    %298 = vmatpush1.msra.mxu0 0.0
    %299 = vmatprep.subr.mxu0 0.0
    %300 = vmatpush1.msra.mxu0 0.0
    %301 = vmatprep.subr.mxu0 0.0
    %302 = vmatpush1.msra.mxu0 0.0
    %303 = vmatprep.subr.mxu0 0.0
    %304 = vmatpush1.msra.mxu0 0.0
    %305 = vmatprep.subr.mxu0 0.0
    %306 = vmatpush1.msra.mxu0 0.0
    %307 = vmatprep.subr.mxu0 0.0
    %308 = vmatpush1.msra.mxu0 0.0
    %309 = vmatprep.subr.mxu0 0.0
    %310 = vmatpush1.msra.mxu0 0.0
    %311 = vmatprep.subr.mxu0 0.0
    %312 = vmatpush1.msra.mxu0 0.0
    %313 = vmatprep.subr.mxu0 0.0
    %314 = vmatpush1.msra.mxu0 0.0
    %315 = vmatprep.subr.mxu0 0.0
    %316 = vmatpush1.msra.mxu0 0.0
    %317 = vmatprep.subr.mxu0 0.0
    %318 = vmatpush1.msra.mxu0 0.0
    %319 = vmatprep.subr.mxu0 0.0
    %320 = vmatpush1.msra.mxu0 0.0
    %321 = vmatprep.subr.mxu0 0.0
    %322 = vmatpush1.msra.mxu0 0.0
    %323 = vmatprep.subr.mxu0 0.0
    %324 = vmatpush1.msra.mxu0 0.0
    %325 = vmatprep.subr.mxu0 0.0
    %326 = vmatpush1.msra.mxu0 0.0
    %327 = vmatprep.subr.mxu0 0.0
    %328 = vmatpush1.msra.mxu0 0.0
    %329 = vmatprep.mubr.f32.mxu0 0.0
    %330 = vmatmul.mubr.f32.gmra.mrb[0].mxu0 %v263
    %v331 = vpop.f32.mrb[0].mxu0
    %v332 = vadd.f32 %v259, %v331
    %v333 = vpop.f32.mrb[0].mxu0
    %334 = vdwg.mxu0
    %v335 = vmax.f32 %v332, 0.0
    %v336 = vld [vmem:[%s7] sm:$0x1]
    %v338 = vlaneseq
    %v339 = vshrl.u32 %v338, 7
    %v340 = vsub.s32 0, %v339
    %v341 = vrot.slane %v336, %v340
    %v343 = vmul.f32 %v335, %v341
    %v344 = vsel %vm261, %v343, 0.0
    %345 = vadd.xlane.f32.xlu0 %v344
    %v346 = vpop.xlane.xlu0 %345
    %v347 = vld [vmem:[#allocation2] sm:$0x1]
    %v349 = vlaneseq
    %v350 = vshrl.u32 %v349, 7
    %v351 = vsub.s32 0, %v350
    %v352 = vrot.slane %v347, %v351
    %v354 = vadd.f32 %v346, %v352
    %vm355 = vcmask 7168
    %356 = vst.msk [vmem:[%s9] sm:$0xff] %vm355, %v354
    // Predicated region
    $region54: #{tpu_custom_call.1} parent=1 // pred_check
      _
    $region55: #{tpu_custom_call.1} parent=1 // pred_check_branch
      %358 = sbr.rel (0) target = $region57
    $region56: #{tpu_custom_call.1} parent=1 // pred_region
      _
    $region57: #{tpu_custom_call.1} parent=1 // pred_fallthru
      _
    // Predicated region
    $region58: #{tpu_custom_call.1} parent=1 // pred_check
      _
    $region59: #{tpu_custom_call.1} parent=1 // pred_check_branch
      %360 = sbr.rel (0) target = $region61
    $region60: #{tpu_custom_call.1} parent=1 // pred_region
      _
    $region61: #{tpu_custom_call.1} parent=1 // pred_fallthru
      _
    %361 = vsyncpa [#allocation4], 1
    %362 = vsyncpa [#allocation6], 1
    %363 = vsyncpa [#allocation9], 1

</llo_original>
